<compile_context>
chip_gen: v7x
topology: tpu7x:2x2x1
jax: 0.10.0
libtpu: 0.0.40
codegen_flags: <defaults>
</compile_context>

<pallas_src>
import math

import jax
import jax.numpy as jnp
from jax.experimental import pallas as pl
from jax.experimental.pallas import tpu as pltpu


def _round_up(x, m):
    return -(-x // m) * m


def _embed_kernel(x_ref, cr_ref, ci_ref, out_ref):
    # x_ref   : (TB, TL, 2)      I/Q scalars, seq on sublanes, pair on lanes
    # cr_ref  : (TL, Dp)         carrier cos tile   (Dp % 128 == 0)
    # ci_ref  : (TL, Dp)         carrier sin tile
    # out_ref : (TB, TL, 2*Dp)   [..., :Dp] = real, [..., Dp:] = imag
    Dp = cr_ref.shape[-1]
    x = x_ref[...].astype(jnp.float32)
    xr = x[:, :, 0:1]                               # (TB, TL, 1)
    xi = x[:, :, 1:2]                               # (TB, TL, 1)
    cr = cr_ref[...].astype(jnp.float32)[None]      # (1, TL, Dp)
    ci = ci_ref[...].astype(jnp.float32)[None]      # (1, TL, Dp)
    emb_real = xr * cr - xi * ci                    # lane-splat broadcast, VPU
    emb_imag = xr * ci + xi * cr
    # Both half-stores start on a 128-lane boundary (Dp % 128 == 0) ->
    # full, unmasked vst (no lane rotation, no masked partial stores).
    out_ref[:, :, :Dp] = emb_real.astype(out_ref.dtype)
    out_ref[:, :, Dp:] = emb_imag.astype(out_ref.dtype)


def make_carrier(d_model, max_len=2048, dtype=jnp.float32):
    """Deterministic buffer, identical math to the torch __init__."""
    carrier_freq = jnp.linspace(-0.1, 0.1, d_model, dtype=dtype)         # (D,)
    t = jnp.arange(max_len, dtype=dtype)                                 # (max_len,)
    phase = (-2.0 * math.pi) * carrier_freq[None, :] * t[:, None]        # (max_len, D)
    return jnp.cos(phase), jnp.sin(phase)


def _sublane_align(*dtypes):
    """Sublane packing factor: 8 for 32-bit, 16 for bf16, 32 for int8/fp8."""
    a = 8
    for dt in dtypes:
        isz = jnp.dtype(dt).itemsize
        a = max(a, 8 * max(1, 4 // max(1, isz)))
    return a


def _footprint(tb, tl, Dp, x_isz, c_isz, o_isz):
    """Double-buffered per-step VMEM bytes for tiles (tb, tl)."""
    x_blk = tb * tl * 128 * x_isz          # (TL, 2) lanes pad to 128 in VMEM
    c_blk = 2 * tl * Dp * c_isz            # cos + sin tiles
    o_blk = tb * tl * 2 * Dp * o_isz       # output tile
    return 2 * (x_blk + c_blk + o_blk)


def _vmem_limits():
    """Generation-aware (physical_cap, scoped_limit, tile_budget) in bytes."""
    vmem_cap = 64 << 20                    # conservative default (v7x per-TC)
    try:
        info = pltpu.get_tpu_info()
        cap = getattr(info, "vmem_capacity_bytes", None)
        if cap:
            vmem_cap = int(cap)
    except Exception:
        pass
    vmem_limit = (vmem_cap * 3) // 4       # ~96 MiB v5e/v6e, ~48 MiB v7x
    budget = vmem_limit // 2               # ~50% of the scoped limit for tiles
    return vmem_cap, vmem_limit, budget


def _auto_seq_tile(L, Dp, x_isz, c_isz, o_isz, budget, align):
    if L <= 2 * align:
        return L                           # single full-L tile
    # Prefer >= 2 L-tiles so the "parallel" lt axis can be sharded across
    # v7x's two TensorCores (near-free on v5e/v6e at these tile sizes).
    tl_cap = _round_up(-(-L // 2), align)
    # Double-buffered bytes per sequence row at TB=1 (linear in TL).
    per_row = 2 * (128 * x_isz + 2 * Dp * (c_isz + o_isz))
    tl_budget = max(align, (budget // per_row) // align * align)
    return max(align, min(tl_cap, tl_budget))


def _auto_batch_tile(B, tl, Dp, x_isz, c_isz, o_isz, budget):
    per_b = tl * (128 * x_isz + 2 * Dp * o_isz)
    avail = budget // 2 - 2 * tl * Dp * c_isz
    if per_b <= 0 or avail < per_b:
        return 1
    return int(max(1, min(B, avail // per_b)))


def _validate_seq_tile(tl, L, align):
    """Round user-provided seq tiles so the (8,128) sublane rule holds."""
    tl = int(tl)
    if tl >= L:
        return L
    return min(L, max(align, (tl // align) * align))


def my_embedding(x, carrier_real, carrier_imag, *, seq_tile=None, batch_tile=None):
    """x: [B, L, 2] -> emb: [B, L, 2, D]  (same semantics as myEmbedding.forward)."""
    B, L, M = x.shape
    assert M == 2, "last dim of x must hold the I/Q pair"
    D = carrier_real.shape[-1]
    out_dtype = jnp.result_type(x.dtype, carrier_real.dtype)
    x_isz = jnp.dtype(x.dtype).itemsize
    c_isz = jnp.dtype(carrier_real.dtype).itemsize
    o_isz = jnp.dtype(out_dtype).itemsize

    # Lane-align the embedding dim so both output halves are full stores.
    Dp = _round_up(D, 128)
    cr = carrier_real[:L]                  # (L, D)
    ci = carrier_imag[:L]
    if Dp != D:
        cr = jnp.pad(cr, ((0, 0), (0, Dp - D)))
        ci = jnp.pad(ci, ((0, 0), (0, Dp - D)))

    align = _sublane_align(x.dtype, carrier_real.dtype, out_dtype)
    vmem_cap, vmem_limit, budget = _vmem_limits()

    TL = (_auto_seq_tile(L, Dp, x_isz, c_isz, o_isz, budget, align)
          if seq_tile is None else _validate_seq_tile(seq_tile, L, align))
    TB = (_auto_batch_tile(B, TL, Dp, x_isz, c_isz, o_isz, budget)
          if batch_tile is None else max(1, min(int(batch_tile), B)))

    step_bytes = _footprint(TB, TL, Dp, x_isz, c_isz, o_isz)
    if step_bytes > budget:
        # Degenerate shapes (huge D): raise the scoped limit toward physical
        # capacity but always leave >= 8 MiB headroom for compiler scratch.
        vmem_limit = max(vmem_limit,
                         min(step_bytes * 3 // 2, vmem_cap - (8 << 20)))

    grid = (pl.cdiv(L, TL), pl.cdiv(B, TB))

    out = pl.pallas_call(
        _embed_kernel,
        out_shape=jax.ShapeDtypeStruct((B, L, 2 * Dp), out_dtype),
        grid_spec=pltpu.PrefetchScalarGridSpec(
            num_scalar_prefetch=0,
            # lt OUTER, b inner: carrier block index depends only on lt, so
            # each carrier tile is DMA'd from HBM exactly once and reused
            # across the whole inner B loop.
            grid=grid,
            in_specs=[
                pl.BlockSpec((TB, TL, 2), lambda lt, b: (b, lt, 0)),
                pl.BlockSpec((TL, Dp), lambda lt, b: (lt, 0)),
                pl.BlockSpec((TL, Dp), lambda lt, b: (lt, 0)),
            ],
            out_specs=pl.BlockSpec((TB, TL, 2 * Dp), lambda lt, b: (b, lt, 0)),
        ),
        compiler_params=pltpu.CompilerParams(
            # lt is the megacore-sharded axis (both v7x cores stream output
            # DMAs); B stays sequential per core -> carrier read-once holds.
            dimension_semantics=("parallel", "arbitrary"),
            vmem_limit_bytes=int(vmem_limit),
        ),
    )(x, cr, ci)

    out = out.reshape(B, L, 2, Dp)         # free reshape (contiguous)
    if Dp != D:
        # TODO(synk): this slice is one extra XLA copy on the padded-lane
        # path; production shapes should use d_model % 128 == 0 to stay on
        # the zero-copy path.
        out = out[..., :D]
    return out


def _reference(x, carrier_real, carrier_imag):
    """Pure-JAX transcription of the torch forward, for correctness checks."""
    B, L, _ = x.shape
    cr = carrier_real[:L][None]            # (1, L, D)
    ci = carrier_imag[:L][None]            # (1, L, D)
    xr = x[..., 0:1]                       # (B, L, 1)
    xi = x[..., 1:2]                       # (B, L, 1)
    emb_real = xr * cr - xi * ci
    emb_imag = xr * ci + xi * cr
    return jnp.stack([emb_real, emb_imag], axis=2)   # (B, L, 2, D)


if __name__ == "__main__":
    key = jax.random.PRNGKey(0)

    # Case 1: module-implied small shape; D=32 is not a multiple of 128, so
    # this exercises the lane-padded output path (Dp=128).
    B, L, D, max_len = 2, 8, 32, 64
    x = jax.random.normal(key, (B, L, 2), dtype=jnp.float32)
    cr1, ci1 = make_carrier(D, max_len=max_len)
    emb = jax.block_until_ready(my_embedding(x, cr1, ci1))
    ref = _reference(x, cr1, ci1)
    assert emb.shape == (B, L, 2, D), emb.shape
    assert jnp.allclose(emb, ref, atol=1e-5, rtol=1e-5), "mismatch vs reference (case 1)"

    # Case 2: lane-aligned D (zero-copy path), multiple seq tiles (forced).
    B2, L2, D2 = 2, 32, 128
    x2 = jax.random.normal(jax.random.PRNGKey(0), (B2, L2, 2), dtype=jnp.float32)
    cr2, ci2 = make_carrier(D2, max_len=64)
    emb2 = jax.block_until_ready(my_embedding(x2, cr2, ci2, seq_tile=8))
    ref2 = _reference(x2, cr2, ci2)
    assert emb2.shape == (B2, L2, 2, D2), emb2.shape
    assert jnp.allclose(emb2, ref2, atol=1e-5, rtol=1e-5), "mismatch vs reference (case 2)"

    # Case 3: non-divisor L and B -> partial edge blocks on both grid axes
    # (validates the OOB-dropped boundary behaviour against the reference).
    B3, L3, D3 = 5, 20, 128
    x3 = jax.random.normal(jax.random.PRNGKey(0), (B3, L3, 2), dtype=jnp.float32)
    cr3, ci3 = make_carrier(D3, max_len=64)
    emb3 = jax.block_until_ready(my_embedding(x3, cr3, ci3, seq_tile=8, batch_tile=2))
    ref3 = _reference(x3, cr3, ci3)
    assert emb3.shape == (B3, L3, 2, D3), emb3.shape
    assert jnp.allclose(emb3, ref3, atol=1e-5, rtol=1e-5), "mismatch vs reference (case 3)"

    # Case 4: fully automatic tiling (lt axis split in two, batch tile auto).
    B4, L4, D4 = 2, 48, 256
    x4 = jax.random.normal(jax.random.PRNGKey(0), (B4, L4, 2), dtype=jnp.float32)
    cr4, ci4 = make_carrier(D4, max_len=64)
    emb4 = jax.block_until_ready(my_embedding(x4, cr4, ci4))
    ref4 = _reference(x4, cr4, ci4)
    assert emb4.shape == (B4, L4, 2, D4), emb4.shape
    assert jnp.allclose(emb4, ref4, atol=1e-5, rtol=1e-5), "mismatch vs reference (case 4)"

    print("KERNEL_OK")
</pallas_src>

<mosaic_0001>
module attributes {stable_mosaic.version = 11 : i64} {
  func.func @_embed_kernel(%arg0: i32, %arg1: i32, %arg2: memref<2x8x2xf32, #tpu.memory_space<vmem>>, %arg3: memref<8x128xf32, #tpu.memory_space<vmem>>, %arg4: memref<8x128xf32, #tpu.memory_space<vmem>>, %arg5: memref<2x8x256xf32, #tpu.memory_space<vmem>>) attributes {dimension_semantics = [#tpu.dimension_semantics<parallel>, #tpu.dimension_semantics<arbitrary>], iteration_bounds = array<i64: 1, 1>, scalar_prefetch = 0 : i64, scratch_operands = 0 : i64, tpu.core_type = #tpu.core_type<tc>, window_params = [{transform_indices = @transform_0, window_bounds = array<i64: 2, 8, 2>}, {transform_indices = @transform_1, window_bounds = array<i64: 8, 128>}, {transform_indices = @transform_2, window_bounds = array<i64: 8, 128>}, {transform_indices = @transform_3, window_bounds = array<i64: 2, 8, 256>}]} {
    %c0 = arith.constant 0 : index
    %c0_0 = arith.constant 0 : index
    %c0_1 = arith.constant 0 : index
    %0 = vector.load %arg2[%c0, %c0_0, %c0_1] : memref<2x8x2xf32, #tpu.memory_space<vmem>>, vector<2x8x2xf32>
    %1 = vector.extract_strided_slice %0 {offsets = [0, 0, 0], sizes = [2, 8, 1], strides = [1, 1, 1]} : vector<2x8x2xf32> to vector<2x8x1xf32>
    %2 = vector.extract_strided_slice %0 {offsets = [0, 0, 1], sizes = [2, 8, 1], strides = [1, 1, 1]} : vector<2x8x2xf32> to vector<2x8x1xf32>
    %c0_2 = arith.constant 0 : index
    %c0_3 = arith.constant 0 : index
    %3 = vector.load %arg3[%c0_2, %c0_3] : memref<8x128xf32, #tpu.memory_space<vmem>>, vector<8x128xf32>
    %4 = vector.shape_cast %3 : vector<8x128xf32> to vector<1x8x128xf32>
    %c0_4 = arith.constant 0 : index
    %c0_5 = arith.constant 0 : index
    %5 = vector.load %arg4[%c0_4, %c0_5] : memref<8x128xf32, #tpu.memory_space<vmem>>, vector<8x128xf32>
    %6 = vector.shape_cast %5 : vector<8x128xf32> to vector<1x8x128xf32>
    %7 = vector.broadcast %1 : vector<2x8x1xf32> to vector<2x8x128xf32>
    %8 = vector.broadcast %4 : vector<1x8x128xf32> to vector<2x8x128xf32>
    %9 = arith.mulf %7, %8 : vector<2x8x128xf32>
    %10 = vector.broadcast %2 : vector<2x8x1xf32> to vector<2x8x128xf32>
    %11 = vector.broadcast %6 : vector<1x8x128xf32> to vector<2x8x128xf32>
    %12 = arith.mulf %10, %11 : vector<2x8x128xf32>
    %13 = arith.subf %9, %12 : vector<2x8x128xf32>
    %14 = vector.broadcast %1 : vector<2x8x1xf32> to vector<2x8x128xf32>
    %15 = vector.broadcast %6 : vector<1x8x128xf32> to vector<2x8x128xf32>
    %16 = arith.mulf %14, %15 : vector<2x8x128xf32>
    %17 = vector.broadcast %2 : vector<2x8x1xf32> to vector<2x8x128xf32>
    %18 = vector.broadcast %4 : vector<1x8x128xf32> to vector<2x8x128xf32>
    %19 = arith.mulf %17, %18 : vector<2x8x128xf32>
    %20 = arith.addf %16, %19 : vector<2x8x128xf32>
    %c0_6 = arith.constant 0 : index
    %c0_7 = arith.constant 0 : index
    %c0_8 = arith.constant 0 : index
    %21 = vector.load %arg5[%c0_6, %c0_7, %c0_8] : memref<2x8x256xf32, #tpu.memory_space<vmem>>, vector<2x8x128xf32>
    tpu.vector_store %arg5[%c0_6, %c0_7, %c0_8], %13 {strides = array<i32>} : memref<2x8x256xf32, #tpu.memory_space<vmem>>, vector<2x8x128xf32>,
    %c0_9 = arith.constant 0 : index
    %c0_10 = arith.constant 0 : index
    %c128 = arith.constant 128 : index
    %22 = vector.load %arg5[%c0_9, %c0_10, %c128] : memref<2x8x256xf32, #tpu.memory_space<vmem>>, vector<2x8x128xf32>
    tpu.vector_store %arg5[%c0_9, %c0_10, %c128], %20 {strides = array<i32>} : memref<2x8x256xf32, #tpu.memory_space<vmem>>, vector<2x8x128xf32>,
    return
  }
  func.func @transform_0(%arg0: i32, %arg1: i32) -> (i32, i32, i32) {
    %c0_i32 = arith.constant 0 : i32
    %c0_i32_0 = arith.constant 0 : i32
    return %arg1, %arg0, %c0_i32 : i32, i32, i32
  }
  func.func @transform_1(%arg0: i32, %arg1: i32) -> (i32, i32) {
    %c0_i32 = arith.constant 0 : i32
    %c0_i32_0 = arith.constant 0 : i32
    return %arg0, %c0_i32 : i32, i32
  }
  func.func @transform_2(%arg0: i32, %arg1: i32) -> (i32, i32) {
    %c0_i32 = arith.constant 0 : i32
    %c0_i32_0 = arith.constant 0 : i32
    return %arg0, %c0_i32 : i32, i32
  }
  func.func @transform_3(%arg0: i32, %arg1: i32) -> (i32, i32, i32) {
    %c0_i32 = arith.constant 0 : i32
    %c0_i32_0 = arith.constant 0 : i32
    return %arg1, %arg0, %c0_i32 : i32, i32, i32
  }
}

</mosaic_0001>

<llo_original>
// kernel: tpu_custom_call.1
$region0: #{tpu_custom_call.1}
  #allocation0 [shape = 'u32[]', space=smem, size = 0x4, offset = 0x4, fixed_abs, tag = 'smem constant byte address 0x4 - core index']
  #allocation1 [shape = 'u32[144,128]{1,0:T(1,128)}', space=vmem, size = 0x12000, scoped, tag = 'internal scratch']
  %s0 = inlined_call_operand.vmem [shape: f32[2,8,2], index: 0, kind: input, shape index: {}]
  %s1 = inlined_call_operand.vmem [shape: f32[8,128], index: 1, kind: input, shape index: {}]
  %s2 = inlined_call_operand.vmem [shape: f32[8,128], index: 2, kind: input, shape index: {}]
  %s3 = inlined_call_operand.hbm [shape: f32[2,8,256], index: 3, kind: output, shape index: {}]
  %s4 = sld [smem:[#allocation0]]
  $region22: #{tpu_custom_call.1} parent=0
    _
  %s6 = ssub.s32 1, %s4
  %s7 = scalar_select 0, %s6, %s4
  $region1: #{tpu_custom_call.1} parent=0
    #allocation2 [shape = 'u8[16384]{0}', space=vmem, size = 0x4000, scoped, tag = 'output window, operand 0, single buffered']
    #allocation3 [shape = 's32[1]{0}', space=sflag, size = 0x4, scoped, tag = 'scoped memory for tpu_custom_call.1']
    %8 = vsyncpa [#allocation3], 0
    // Predicated region
    $region2: #{tpu_custom_call.1} parent=1 // pred_check
      _
    $region3: #{tpu_custom_call.1} parent=1 // pred_check_branch
      %10 = sbr.rel (0) target = $region5
    $region4: #{tpu_custom_call.1} parent=1 // pred_region
      _
    $region5: #{tpu_custom_call.1} parent=1 // pred_fallthru
      _
    // Predicated region
    $region6: #{tpu_custom_call.1} parent=1 // pred_check
      _
    $region7: #{tpu_custom_call.1} parent=1 // pred_check_branch
      %12 = sbr.rel (0) target = $region9
    $region8: #{tpu_custom_call.1} parent=1 // pred_region
      _
    $region9: #{tpu_custom_call.1} parent=1 // pred_fallthru
      _
    // Predicated region
    $region10: #{tpu_custom_call.1} parent=1 // pred_check
      _
    $region11: #{tpu_custom_call.1} parent=1 // pred_check_branch
      %14 = sbr.rel (0) target = $region13
    $region12: #{tpu_custom_call.1} parent=1 // pred_region
      _
    $region13: #{tpu_custom_call.1} parent=1 // pred_fallthru
      _
    %v15 = vld [vmem:[%s0] sm:$0xff]
    %v16 = vld [vmem:[%s0 + $0x8] sm:$0xff]
    %v17 = vld [vmem:[%s1] sm:$0xff]
    %v18 = vld [vmem:[%s2] sm:$0xff]
    %20 = vset.pattern.permute.xlu0 0
    %21 = vperm.xlu0 %20, %v15
    %v22 = vpop.permute.xlu0 %21
    %25 = vset.pattern.permute.xlu0 0
    %26 = vperm.xlu0 %25, %v16
    %v27 = vpop.permute.xlu0 %26
    %v29 = vmul.f32 %v22, %v17
    %v30 = vmul.f32 %v27, %v17
    %31 = vset.pattern.permute.xlu0 1
    %32 = vperm.xlu0 %31, %v15
    %v33 = vpop.permute.xlu0 %32
    %35 = vset.pattern.permute.xlu0 1
    %36 = vperm.xlu0 %35, %v16
    %v37 = vpop.permute.xlu0 %36
    %v39 = vmul.f32 %v33, %v18
    %v40 = vmul.f32 %v37, %v18
    %v41 = vsub.f32 %v29, %v39
    %v42 = vsub.f32 %v30, %v40
    %v43 = vmul.f32 %v22, %v18
    %v44 = vmul.f32 %v27, %v18
    %v45 = vmul.f32 %v33, %v17
    %v46 = vmul.f32 %v37, %v17
    %v47 = vadd.f32 %v43, %v45
    %v48 = vadd.f32 %v44, %v46
    %49 = vst [vmem:[#allocation2] sm:$0xff] %v41
    %50 = vst [vmem:[#allocation2 + $0x10] sm:$0xff] %v42
    %51 = vst [vmem:[#allocation2 + $0x8] sm:$0xff] %v47
    %52 = vst [vmem:[#allocation2 + $0x18] sm:$0xff] %v48
    // Predicated region
    $region14: #{tpu_custom_call.1} parent=1 // pred_check
      _
    $region15: #{tpu_custom_call.1} parent=1 // pred_check_branch
      %54 = sbr.rel (0) target = $region17
    $region16: #{tpu_custom_call.1} parent=1 // pred_region
      %s56 = ssub.s32 512, 512
      %57 = vsyncadd [#allocation3], %s56
      %s58 = sshll.u32 [#allocation2], 4
      %s59 = int_to_ptr.vmem [resolvable:$true] %s58
      %64 = dma.vmem_to_hbm [thread:$0]  %s59, 512, %s3, [#allocation3], 256, 256, 16
    $region17: #{tpu_custom_call.1} parent=1 // pred_fallthru
      _
    // Predicated region
    $region18: #{tpu_custom_call.1} parent=1 // pred_check
      _
    $region19: #{tpu_custom_call.1} parent=1 // pred_check_branch
      %66 = sbr.rel (0) target = $region21
    $region20: #{tpu_custom_call.1} parent=1 // pred_region
      %67 = dma.done [#allocation3], 512
    $region21: #{tpu_custom_call.1} parent=1 // pred_fallthru
      _
    %68 = vsyncpa [#allocation3], 1

</llo_original>
